<compile_context>
chip_gen: v6e
topology: v6e:2x2x1
jax: 0.10.0
libtpu: 0.0.40
codegen_flags: <defaults>
</compile_context>

<pallas_src>
import functools
import math

import jax
import jax.numpy as jnp
from jax.experimental import pallas as pl
from jax.experimental.pallas import tpu as pltpu


def _fattention1d_kernel(q_ref, k_ref, v_ref, o_ref, acc_ref, *, reg, k_block):
    # q_ref: (G, Q, D)  k_ref: (G, Kt, D)  v_ref: (G, Kt, Dv)
    # o_ref: (G, Q, Dv) acc_ref: (G, Q, Dv) f32 scratch
    kt = pl.program_id(1)

    @pl.when(kt == 0)
    def _():
        acc_ref[...] = jnp.zeros_like(acc_ref)

    q = q_ref[...]
    k = k_ref[...]
    v = v_ref[...]

    # Scores for this (head-block, K-tile): s[g, q, k] = sum_d q[g,q,d]*k[g,k,d].
    # bf16 inputs -> single MXU pass; f32 accumulation.  (jnp.dot is not
    # batched, hence einsum.)
    s = jnp.einsum("gqd,gkd->gqk", q, k, preferred_element_type=jnp.float32)

    if reg > 0:  # static Python branch: reg is a compile-time constant
        qi = jax.lax.broadcasted_iota(jnp.int32, s.shape, 1)
        ki = jax.lax.broadcasted_iota(jnp.int32, s.shape, 2) + kt * k_block
        s = s + jnp.where(qi == ki, jnp.float32(reg), jnp.float32(0.0))

    # torch.softmax(att, dim=qdim): normalize over the QUERY axis (axis 1
    # here).  Each (g, k) column is independent, so a K tile is fully
    # self-contained and its att@V contribution just accumulates over tiles.
    m = jnp.max(s, axis=1, keepdims=True)
    e = jnp.exp(s - m)
    r = pl.reciprocal(jnp.sum(e, axis=1, keepdims=True), approx=True)
    att = e * r

    acc_ref[...] += jnp.einsum(
        "gqk,gkv->gqv", att.astype(v.dtype), v,
        preferred_element_type=jnp.float32)

    @pl.when(kt == pl.num_programs(1) - 1)
    def _():
        o_ref[...] = acc_ref[...].astype(o_ref.dtype)


def _tpu_vmem_and_multitc():
    """Return (vmem_capacity_bytes, is_multi_tensorcore_chip), conservatively."""
    vmem = None
    try:
        info = pltpu.get_tpu_info()
        vmem = getattr(info, "vmem_capacity_bytes", None)
    except Exception:
        vmem = None
    if not vmem:
        vmem = 64 << 20  # unknown -> assume the smallest (v7x-sized) VMEM
    # Heuristic: v7x exposes 64 MiB VMEM per TC and has 2 TCs/chip; v5e/v6e
    # expose 128 MiB and have a single TC.
    multi_tc = vmem <= (64 << 20)
    return int(vmem), multi_tc


def _plan_blocks(bh, q_len, k_len, d, dv, in_itemsize, out_itemsize):
    """Pick (heads_per_block G, K tile Kt, vmem_limit_bytes) from one budget."""
    vmem, multi_tc = _tpu_vmem_and_multitc()
    vmem_limit = min(vmem * 3 // 4, 100 << 20)   # ~48 MiB on v7x, ~96 MiB on v5e/v6e
    budget = int(vmem_limit * 0.85)              # headroom for compiler scratch

    # Splitting the head axis only pays on multi-TC chips; on single-TC chips
    # the grid is a serial loop and bigger blocks are strictly better.
    g_cap = max(1, bh // 2) if multi_tc else bh

    g_divs = [g for g in range(g_cap, 0, -1) if bh % g == 0]
    k_divs = [kt for kt in range(k_len, 0, -1) if k_len % kt == 0]
    k_floor = min(k_len, 256)

    def estimate(g, kt):
        blocks = (g * in_itemsize * (q_len * d + kt * d + kt * dv)
                  + g * out_itemsize * q_len * dv)
        resident = 4 * g * q_len * dv        # f32 accumulator scratch (not pipelined)
        temps = 3 * 4 * g * q_len * kt       # f32 scores / exp / att temporaries
        return 2 * blocks + resident + temps  # x2: double-buffered pipeline blocks

    for floor in (k_floor, 1):
        for g in g_divs:                      # prefer large head blocks ...
            for kt in k_divs:                 # ... then the largest fitting K tile
                if kt < floor:
                    break
                if estimate(g, kt) <= budget:
                    return g, kt, vmem_limit
    return 1, 1, vmem_limit                   # pathological budget; still correct


def fattention1d_forward(qry, key, val, *, reg=0.0, compute_dtype=jnp.bfloat16,
                         heads_per_block=None, k_block=None):
    """FAttention1d(dim=ndim-2).forward.

    qry: (B, *, Q, d)   key: (B, *, K, d)   val: (B, *, K, v)  ->  (B, *, Q, v)
    """
    *lead, Q, D = qry.shape
    *lead_k, K, Dk = key.shape
    *lead_v, Kv, Dv = val.shape
    assert tuple(lead) == tuple(lead_k) == tuple(lead_v), "batch dims must match"
    assert Dk == D and Kv == K
    if reg > 0:
        assert Q == K, "reg > 0 adds eye(Q); the torch broadcast requires Q == K"

    out_dtype = qry.dtype
    cdt = compute_dtype if compute_dtype is not None else qry.dtype

    BH = math.prod(lead) if lead else 1
    # Free reshapes (no data movement): fold (B, *) into one head axis.
    q2 = qry.reshape(BH, Q, D).astype(cdt)
    k2 = key.reshape(BH, K, D).astype(cdt)
    v2 = val.reshape(BH, K, Dv).astype(cdt)

    G, Kt, vmem_limit = _plan_blocks(
        BH, Q, K, D, Dv,
        in_itemsize=jnp.dtype(cdt).itemsize,
        out_itemsize=jnp.dtype(out_dtype).itemsize)
    if heads_per_block is not None:
        G = heads_per_block
    if k_block is not None:
        Kt = k_block
    assert BH % G == 0 and K % Kt == 0

    kernel = functools.partial(_fattention1d_kernel, reg=float(reg), k_block=Kt)

    out2 = pl.pallas_call(
        kernel,
        out_shape=jax.ShapeDtypeStruct((BH, Q, Dv), out_dtype),
        grid_spec=pltpu.PrefetchScalarGridSpec(
            num_scalar_prefetch=0,
            grid=(BH // G, K // Kt),          # reduction (K) axis last
            in_specs=[
                pl.BlockSpec((G, Q, D), lambda i, j: (i, 0, 0)),
                pl.BlockSpec((G, Kt, D), lambda i, j: (i, j, 0)),
                pl.BlockSpec((G, Kt, Dv), lambda i, j: (i, j, 0)),
            ],
            out_specs=pl.BlockSpec((G, Q, Dv), lambda i, j: (i, 0, 0)),
            scratch_shapes=[pltpu.VMEM((G, Q, Dv), jnp.float32)],
        ),
        compiler_params=pltpu.CompilerParams(
            dimension_semantics=("parallel", "arbitrary"),
            vmem_limit_bytes=int(vmem_limit),
        ),
    )(q2, k2, v2)

    return out2.reshape(*lead, Q, Dv)


def _reference_forward(qry, key, val, reg=0.0, dim=None):
    # Pure-JAX transcription of FAttention1d.forward (dot_scale = 1).
    dim = qry.ndim - 2 if dim is None else dim
    k_t = jnp.swapaxes(key, dim, dim + 1)
    att = jnp.matmul(qry, k_t, precision=jax.lax.Precision.HIGHEST)
    if reg > 0:
        att = att + reg * jnp.eye(att.shape[dim], dtype=att.dtype)
    att = jax.nn.softmax(att, axis=dim)
    return jnp.matmul(att, val, precision=jax.lax.Precision.HIGHEST)


if __name__ == "__main__":
    root = jax.random.PRNGKey(0)
    kq, kk, kv = jax.random.split(root, 3)

    # (B, *, Q, d) with dim=2: batch=2, heads=4, seq (Q=K)=8, head_dim=128.
    # head_dim=128 keeps every HBM-facing load/store lane-dense.  At these
    # tiny Q/K the kernel is purely HBM-bound; MXU/softmax lane utilization
    # only starts to matter at realistic sequence lengths (>=128).
    B, H, Q, K, D = 2, 4, 8, 8, 128
    qry = jax.random.normal(kq, (B, H, Q, D), dtype=jnp.float32)
    key = jax.random.normal(kk, (B, H, K, D), dtype=jnp.float32)
    val = jax.random.normal(kv, (B, H, K, D), dtype=jnp.float32)

    reg = 0.5  # exercise the reg * eye(Q) path too
    out = fattention1d_forward(qry, key, val, reg=reg)
    out = jax.block_until_ready(out)
    assert out.shape == (B, H, Q, D)
    assert out.dtype == qry.dtype

    # Reference computed from the same bf16-rounded inputs (isolates kernel
    # error from the input downcast).  Remaining differences: the bf16 att@V
    # MXU pass and the approx reciprocal (~a few e-3), so 2e-2 has margin.
    qb = qry.astype(jnp.bfloat16).astype(jnp.float32)
    kb = key.astype(jnp.bfloat16).astype(jnp.float32)
    vb = val.astype(jnp.bfloat16).astype(jnp.float32)
    ref = _reference_forward(qb, kb, vb, reg=reg)
    max_err = float(jnp.max(jnp.abs(out - ref)))
    assert jnp.allclose(out, ref, atol=2e-2, rtol=2e-2), f"max abs err = {max_err}"

    print("KERNEL_OK")
</pallas_src>

<mosaic_0001>
module attributes {stable_mosaic.version = 11 : i64} {
  func.func @_fattention1d_kernel(%arg0: i32, %arg1: i32, %arg2: memref<4x8x128xbf16, #tpu.memory_space<vmem>>, %arg3: memref<4x8x128xbf16, #tpu.memory_space<vmem>>, %arg4: memref<4x8x128xbf16, #tpu.memory_space<vmem>>, %arg5: memref<4x8x128xf32, #tpu.memory_space<vmem>>, %arg6: memref<4x8x128xf32, #tpu.memory_space<vmem>>) attributes {dimension_semantics = [#tpu.dimension_semantics<parallel>, #tpu.dimension_semantics<arbitrary>], iteration_bounds = array<i64: 2, 1>, scalar_prefetch = 0 : i64, scratch_operands = 1 : i64, tpu.core_type = #tpu.core_type<tc>, window_params = [{transform_indices = @transform_0, window_bounds = array<i64: 4, 8, 128>}, {transform_indices = @transform_1, window_bounds = array<i64: 4, 8, 128>}, {transform_indices = @transform_2, window_bounds = array<i64: 4, 8, 128>}, {transform_indices = @transform_3, window_bounds = array<i64: 4, 8, 128>}]} {
    %c0_i32 = arith.constant 0 : i32
    %0 = arith.cmpi eq, %arg1, %c0_i32 : i32
    %1 = arith.extui %0 : i1 to i32
    %c0_i32_0 = arith.constant 0 : i32
    %2 = arith.cmpi ne, %1, %c0_i32_0 : i32
    scf.if %2 {
      %cst_22 = arith.constant 0.000000e+00 : f32
      %35 = vector.broadcast %cst_22 : f32 to vector<4x8x128xf32>
      %c0_23 = arith.constant 0 : index
      %c0_24 = arith.constant 0 : index
      %c0_25 = arith.constant 0 : index
      %36 = vector.load %arg6[%c0_23, %c0_24, %c0_25] : memref<4x8x128xf32, #tpu.memory_space<vmem>>, vector<4x8x128xf32>
      tpu.vector_store %arg6[%c0_23, %c0_24, %c0_25], %35 {strides = array<i32>} : memref<4x8x128xf32, #tpu.memory_space<vmem>>, vector<4x8x128xf32>,
    } else {
    }
    %c0 = arith.constant 0 : index
    %c0_1 = arith.constant 0 : index
    %c0_2 = arith.constant 0 : index
    %3 = vector.load %arg2[%c0, %c0_1, %c0_2] : memref<4x8x128xbf16, #tpu.memory_space<vmem>>, vector<4x8x128xbf16>
    %c0_3 = arith.constant 0 : index
    %c0_4 = arith.constant 0 : index
    %c0_5 = arith.constant 0 : index
    %4 = vector.load %arg3[%c0_3, %c0_4, %c0_5] : memref<4x8x128xbf16, #tpu.memory_space<vmem>>, vector<4x8x128xbf16>
    %c0_6 = arith.constant 0 : index
    %c0_7 = arith.constant 0 : index
    %c0_8 = arith.constant 0 : index
    %5 = vector.load %arg4[%c0_6, %c0_7, %c0_8] : memref<4x8x128xbf16, #tpu.memory_space<vmem>>, vector<4x8x128xbf16>
    "tpu.trace_start"() <{level = 10 : i32, message = "gqd,gkd->gqk"}> : () -> ()
    %cst = arith.constant dense<0.000000e+00> : vector<4x8x8xf32>
    %6 = tpu.matmul %3, %4, %cst {dimension_numbers = #tpu.dot_dimension_numbers<[2], [2], [1], [1], [0, 0, 0, 1, 1, 1], [0], [0]>} : vector<4x8x128xbf16>, vector<4x8x128xbf16>, vector<4x8x8xf32> -> vector<4x8x8xf32>
    "tpu.trace_stop"() : () -> ()
    %7 = tpu.iota {dimensions = array<i32: 1>} : vector<4x8x8xi32>
    %8 = tpu.iota {dimensions = array<i32: 2>} : vector<4x8x8xi32>
    %c8_i32 = arith.constant 8 : i32
    %9 = arith.muli %arg1, %c8_i32 : i32
    %10 = vector.broadcast %9 : i32 to vector<4x8x8xi32>
    %11 = arith.addi %8, %10 : vector<4x8x8xi32>
    %12 = arith.cmpi eq, %7, %11 : vector<4x8x8xi32>
    %cst_9 = arith.constant 5.000000e-01 : f32
    %cst_10 = arith.constant 0.000000e+00 : f32
    %13 = vector.broadcast %cst_9 : f32 to vector<4x8x8xf32>
    %14 = vector.broadcast %cst_10 : f32 to vector<4x8x8xf32>
    %15 = arith.select %12, %13, %14 : vector<4x8x8xi1>, vector<4x8x8xf32>
    %16 = arith.addf %6, %15 : vector<4x8x8xf32>
    %cst_11 = arith.constant dense<0xFF800000> : vector<4x8xf32>
    %17 = vector.multi_reduction <maximumf>, %16, %cst_11 [1] : vector<4x8x8xf32> to vector<4x8xf32>
    %18 = vector.shape_cast %17 : vector<4x8xf32> to vector<4x1x8xf32>
    %19 = vector.broadcast %18 : vector<4x1x8xf32> to vector<4x8x8xf32>
    %20 = arith.subf %16, %19 : vector<4x8x8xf32>
    %21 = math.exp %20 : vector<4x8x8xf32>
    %cst_12 = arith.constant dense<0.000000e+00> : vector<4x8xf32>
    %22 = vector.multi_reduction <add>, %21, %cst_12 [1] : vector<4x8x8xf32> to vector<4x8xf32>
    %23 = vector.shape_cast %22 : vector<4x8xf32> to vector<4x1x8xf32>
    %24 = tpu.reciprocal %23 {approx = true} : vector<4x1x8xf32> -> vector<4x1x8xf32>
    %25 = vector.broadcast %24 : vector<4x1x8xf32> to vector<4x8x8xf32>
    %26 = arith.mulf %21, %25 : vector<4x8x8xf32>
    %c0_13 = arith.constant 0 : index
    %c0_14 = arith.constant 0 : index
    %c0_15 = arith.constant 0 : index
    %27 = vector.load %arg6[%c0_13, %c0_14, %c0_15] : memref<4x8x128xf32, #tpu.memory_space<vmem>>, vector<4x8x128xf32>
    %28 = arith.truncf %26 : vector<4x8x8xf32> to vector<4x8x8xbf16>
    "tpu.trace_start"() <{level = 10 : i32, message = "gqk,gkv->gqv"}> : () -> ()
    %cst_16 = arith.constant dense<0.000000e+00> : vector<4x8x128xf32>
    %29 = tpu.matmul %28, %5, %cst_16 {dimension_numbers = #tpu.dot_dimension_numbers<[2], [1], [1], [2], [0, 0, 0, 1, 1, 2], [0], [0]>} : vector<4x8x8xbf16>, vector<4x8x128xbf16>, vector<4x8x128xf32> -> vector<4x8x128xf32>
    "tpu.trace_stop"() : () -> ()
    %30 = arith.addf %27, %29 : vector<4x8x128xf32>
    %c0_17 = arith.constant 0 : index
    %c0_18 = arith.constant 0 : index
    %c0_19 = arith.constant 0 : index
    %31 = vector.load %arg6[%c0_17, %c0_18, %c0_19] : memref<4x8x128xf32, #tpu.memory_space<vmem>>, vector<4x8x128xf32>
    tpu.vector_store %arg6[%c0_17, %c0_18, %c0_19], %30 {strides = array<i32>} : memref<4x8x128xf32, #tpu.memory_space<vmem>>, vector<4x8x128xf32>,
    %c0_i32_20 = arith.constant 0 : i32
    %32 = arith.cmpi eq, %arg1, %c0_i32_20 : i32
    %33 = arith.extui %32 : i1 to i32
    %c0_i32_21 = arith.constant 0 : i32
    %34 = arith.cmpi ne, %33, %c0_i32_21 : i32
    scf.if %34 {
      %c0_22 = arith.constant 0 : index
      %c0_23 = arith.constant 0 : index
      %c0_24 = arith.constant 0 : index
      %35 = vector.load %arg6[%c0_22, %c0_23, %c0_24] : memref<4x8x128xf32, #tpu.memory_space<vmem>>, vector<4x8x128xf32>
      %c0_25 = arith.constant 0 : index
      %c0_26 = arith.constant 0 : index
      %c0_27 = arith.constant 0 : index
      %36 = vector.load %arg5[%c0_25, %c0_26, %c0_27] : memref<4x8x128xf32, #tpu.memory_space<vmem>>, vector<4x8x128xf32>
      tpu.vector_store %arg5[%c0_25, %c0_26, %c0_27], %35 {strides = array<i32>} : memref<4x8x128xf32, #tpu.memory_space<vmem>>, vector<4x8x128xf32>,
    } else {
    }
    return
  }
  func.func @transform_0(%arg0: i32, %arg1: i32) -> (i32, i32, i32) {
    %c0_i32 = arith.constant 0 : i32
    %c0_i32_0 = arith.constant 0 : i32
    %c0_i32_1 = arith.constant 0 : i32
    return %arg0, %c0_i32, %c0_i32_0 : i32, i32, i32
  }
  func.func @transform_1(%arg0: i32, %arg1: i32) -> (i32, i32, i32) {
    %c0_i32 = arith.constant 0 : i32
    %c0_i32_0 = arith.constant 0 : i32
    return %arg0, %arg1, %c0_i32 : i32, i32, i32
  }
  func.func @transform_2(%arg0: i32, %arg1: i32) -> (i32, i32, i32) {
    %c0_i32 = arith.constant 0 : i32
    %c0_i32_0 = arith.constant 0 : i32
    return %arg0, %arg1, %c0_i32 : i32, i32, i32
  }
  func.func @transform_3(%arg0: i32, %arg1: i32) -> (i32, i32, i32) {
    %c0_i32 = arith.constant 0 : i32
    %c0_i32_0 = arith.constant 0 : i32
    %c0_i32_1 = arith.constant 0 : i32
    return %arg0, %c0_i32, %c0_i32_0 : i32, i32, i32
  }
}

</mosaic_0001>

<llo_original>
// kernel: tpu_custom_call.1
$region0: #{tpu_custom_call.1}
  #allocation0 [shape = 'u32[]', space=smem, size = 0x4, offset = 0x4, fixed_abs, tag = 'smem constant byte address 0x4 - core index']
  #allocation1 [shape = 'u32[144,128]{1,0:T(1,128)}', space=vmem, size = 0x12000, scoped, tag = 'internal scratch']
  #allocation2 [shape = 'f32[4,8,128]{2,1,0:T(8,128)}', space=vmem, size = 0x4000, scoped, tag = 'scratch operand']
  %s0 = inlined_call_operand.hbm [shape: bf16[8,8,128], index: 0, kind: input, shape index: {}]
  %s1 = inlined_call_operand.hbm [shape: bf16[8,8,128], index: 1, kind: input, shape index: {}]
  %s2 = inlined_call_operand.hbm [shape: bf16[8,8,128], index: 2, kind: input, shape index: {}]
  %s3 = inlined_call_operand.hbm [shape: f32[8,8,128], index: 3, kind: output, shape index: {}]
  %s4 = sld [smem:[#allocation0]]
  $region65: #{tpu_custom_call.1} parent=0
    _
  %s6 = ssub.s32 1, %s4
  %s7 = scalar_select 0, %s6, %s4
  $region1: #{tpu_custom_call.1} parent=0
    #allocation3 [shape = 'u8[16384]{0}', space=vmem, size = 0x4000, scoped, tag = 'input window, operand 0']
    #allocation4 [shape = 's32[2]{0}', space=sflag, size = 0x8, scoped, tag = 'scoped memory for tpu_custom_call.1']
    #allocation5 [shape = 's32[2]{0}', space=sflag, size = 0x8, scoped, tag = 'scoped memory for tpu_custom_call.1']
    #allocation6 [shape = 'u8[16384]{0}', space=vmem, size = 0x4000, scoped, tag = 'input window, operand 1']
    #allocation7 [shape = 's32[2]{0}', space=sflag, size = 0x8, scoped, tag = 'scoped memory for tpu_custom_call.1']
    #allocation8 [shape = 'u8[16384]{0}', space=vmem, size = 0x4000, scoped, tag = 'input window, operand 2']
    #allocation9 [shape = 'u8[32768]{0}', space=vmem, size = 0x8000, scoped, tag = 'output window, operand 0']
    %8 = vsyncpa [#allocation4], 0
    %s9 = scalar_lea.sflag [#allocation4], 1
    %10 = vsyncpa %s9, 0
    %11 = vsyncpa [#allocation7], 0
    %s12 = scalar_lea.sflag [#allocation7], 1
    %13 = vsyncpa %s12, 0
    %14 = vsyncpa [#allocation5], 0
    %s15 = scalar_lea.sflag [#allocation5], 1
    %16 = vsyncpa %s15, 0
    loop: start=0, step=1, limit=4
    $region2: #{tpu_custom_call.1} parent=1 // loop_pre_header
      _
    $region3: #{tpu_custom_call.1} parent=1 // loop_header
      %s18 = sphi 0, %s22
      %p19 = scmp.ge.s32.totalorder %s18, 4
      %s25 = sphi 0, %s37
      %s26 = sphi 0, %s33
      %s27 = sphi 0, %s25
      %s28 = sphi 0, %s26
      %s29 = sphi 0, %s27
      %s30 = sphi 0, %s28
      %s40 = sphi 0, %s42
      %s43 = sphi 0, %s40
      %s44 = sphi 0, %s43
      %s60 = sphi 0, %s44
      %s68 = sphi 0, %s70
      %s71 = sphi 0, %s68
      %s72 = sphi 0, %s71
      %s88 = sphi 0, %s72
      %s96 = sphi 0, %s98
      %s99 = sphi 0, %s96
      %s100 = sphi 0, %s99
      %s116 = sphi 0, %s100
      %s122 = sphi 0, %s124
      %s125 = sphi 0, %s122
      %s126 = sphi 0, %s125
      %s142 = sphi 0, %s126
    $region4: #{tpu_custom_call.1} parent=1 // loop_header_branch
      %21 = sbr.rel (%p19) target = $region8
    $region5: #{tpu_custom_call.1} parent=1 // loop_body
      %s23 = ssub.s32 %s18, 1
      %s24 = ssub.s32 %s18, 2
      %s31 = sadd.s32 1, %s26
      %p32 = scmp.ge.s32.totalorder %s31, 1
      %s33 = scalar_select %p32, 0, %s31
      %s34 = sadd.s32 1, %s25
      %s35 = scalar_select %p32, %s34, %s25
      %p36 = scmp.ge.s32.totalorder %s35, 2
      %s37 = scalar_select %p36, 0, %s35
      %s38 = ssub.s32 %s25, %s37
      %p39 = scmp.eq.s32.totalorder %s38, 0
      %s41 = sadd.s32 %s40, 1
      %s42 = scalar_select %p39, %s40, %s41
      %p45 = pneg %p39
      %p46 = scmp.eq.s32.totalorder %s18, 1
      %p47 = por %p45, %p46
      %p48 = scmp.ne.s32.totalorder %s40, %s43
      %p49 = scmp.eq.s32.totalorder %s18, 0
      %p50 = por %p48, %p49
      %p51 = scmp.ne.s32.totalorder %s40, %s43
      %p52 = scmp.eq.s32.totalorder %s23, 1
      %p53 = por %p51, %p52
      %p54 = scmp.ne.s32.totalorder %s43, %s44
      %p55 = scmp.eq.s32.totalorder %s23, 0
      %p56 = por %p54, %p55
      %p57 = scmp.ne.s32.totalorder %s43, %s44
      %p58 = scmp.eq.s32.totalorder %s24, 1
      %p59 = por %p57, %p58
      %p61 = scmp.ne.s32.totalorder %s44, %s60
      %p62 = scmp.eq.s32.totalorder %s24, 0
      %p63 = por %p61, %p62
      %s64 = ssub.s32 %s25, %s37
      %s65 = ssub.s32 %s26, %s33
      %s66 = sor.u32 %s64, %s65
      %p67 = scmp.eq.s32.totalorder %s66, 0
      %s69 = sadd.s32 %s68, 1
      %s70 = scalar_select %p67, %s68, %s69
      %p73 = pneg %p67
      %p74 = scmp.eq.s32.totalorder %s18, 1
      %p75 = por %p73, %p74
      %p76 = scmp.ne.s32.totalorder %s68, %s71
      %p77 = scmp.eq.s32.totalorder %s18, 0
      %p78 = por %p76, %p77
      %p79 = scmp.ne.s32.totalorder %s68, %s71
      %p80 = scmp.eq.s32.totalorder %s23, 1
      %p81 = por %p79, %p80
      %p82 = scmp.ne.s32.totalorder %s71, %s72
      %p83 = scmp.eq.s32.totalorder %s23, 0
      %p84 = por %p82, %p83
      %p85 = scmp.ne.s32.totalorder %s71, %s72
      %p86 = scmp.eq.s32.totalorder %s24, 1
      %p87 = por %p85, %p86
      %p89 = scmp.ne.s32.totalorder %s72, %s88
      %p90 = scmp.eq.s32.totalorder %s24, 0
      %p91 = por %p89, %p90
      %s92 = ssub.s32 %s25, %s37
      %s93 = ssub.s32 %s26, %s33
      %s94 = sor.u32 %s92, %s93
      %p95 = scmp.eq.s32.totalorder %s94, 0
      %s97 = sadd.s32 %s96, 1
      %s98 = scalar_select %p95, %s96, %s97
      %p101 = pneg %p95
      %p102 = scmp.eq.s32.totalorder %s18, 1
      %p103 = por %p101, %p102
      %p104 = scmp.ne.s32.totalorder %s96, %s99
      %p105 = scmp.eq.s32.totalorder %s18, 0
      %p106 = por %p104, %p105
      %p107 = scmp.ne.s32.totalorder %s96, %s99
      %p108 = scmp.eq.s32.totalorder %s23, 1
      %p109 = por %p107, %p108
      %p110 = scmp.ne.s32.totalorder %s99, %s100
      %p111 = scmp.eq.s32.totalorder %s23, 0
      %p112 = por %p110, %p111
      %p113 = scmp.ne.s32.totalorder %s99, %s100
      %p114 = scmp.eq.s32.totalorder %s24, 1
      %p115 = por %p113, %p114
      %p117 = scmp.ne.s32.totalorder %s100, %s116
      %p118 = scmp.eq.s32.totalorder %s24, 0
      %p119 = por %p117, %p118
      %s120 = ssub.s32 %s25, %s37
      %p121 = scmp.eq.s32.totalorder %s120, 0
      %s123 = sadd.s32 %s122, 1
      %s124 = scalar_select %p121, %s122, %s123
      %p127 = pneg %p121
      %p128 = scmp.eq.s32.totalorder %s18, 1
      %p129 = por %p127, %p128
      %p130 = scmp.ne.s32.totalorder %s122, %s125
      %p131 = scmp.eq.s32.totalorder %s18, 0
      %p132 = por %p130, %p131
      %p133 = scmp.ne.s32.totalorder %s122, %s125
      %p134 = scmp.eq.s32.totalorder %s23, 1
      %p135 = por %p133, %p134
      %p136 = scmp.ne.s32.totalorder %s125, %s126
      %p137 = scmp.eq.s32.totalorder %s23, 0
      %p138 = por %p136, %p137
      %p139 = scmp.ne.s32.totalorder %s125, %s126
      %p140 = scmp.eq.s32.totalorder %s24, 1
      %p141 = por %p139, %p140
      %p143 = scmp.ne.s32.totalorder %s126, %s142
      %p144 = scmp.eq.s32.totalorder %s24, 0
      %p145 = por %p143, %p144
      %p146 = scmp.le.s32.totalorder 1, %s18
      %p147 = scmp.lt.s32.totalorder %s18, 3
      %p148 = pnand %p146, %p147
      %p149 = pneg %p148
      // Predicated region
      $region9: #{tpu_custom_call.1} parent=5 // pred_check
        _
      $region10: #{tpu_custom_call.1} parent=5 // pred_check_branch
        %151 = sbr.rel (%p148) target = $region12
      $region11: #{tpu_custom_call.1} parent=5 // pred_region
        %s152 = ssub.s32 %s18, 1
      $region12: #{tpu_custom_call.1} parent=5 // pred_fallthru
        _
      %p153 = scmp.lt.s32.totalorder %s18, 2
      // Predicated region
      $region13: #{tpu_custom_call.1} parent=5 // pred_check
        %p154 = pneg %p153
      $region14: #{tpu_custom_call.1} parent=5 // pred_check_branch
        %156 = sbr.rel (%p154) target = $region16
      $region15: #{tpu_custom_call.1} parent=5 // pred_region
        // Predicated region
        $region17: #{tpu_custom_call.1} parent=15 // pred_check
          %p157 = pneg %p50
        $region18: #{tpu_custom_call.1} parent=15 // pred_check_branch
          %159 = sbr.rel (%p157) target = $region20
        $region19: #{tpu_custom_call.1} parent=15 // pred_region
          %s160 = sand.u32 %s40, 1
          %s161 = scalar_lea.sflag [#allocation4], %s160
          %s162 = sand.u32 %s40, 1
          %s163 = smul.addr %s162, 16
          %s164 = scalar_lea.vmem [#allocation3], %s163
          %s165 = smul.u32 4, %s25
          %s167 = ssub.s32 256, 256
          %168 = vsyncadd %s161, %s167
          %s169 = smul.addr %s165, 64
          %s170 = scalar_lea.hbm %s0, %s169
          %s171 = sshll.u32 %s164, 4
          %s172 = int_to_ptr.vmem [resolvable:$true] %s171
          %177 = dma.hbm_to_vmem [thread:$0]  %s170, 256, %s172, %s161, 64, 64, 4
        $region20: #{tpu_custom_call.1} parent=15 // pred_fallthru
          _
        // Predicated region
        $region21: #{tpu_custom_call.1} parent=15 // pred_check
          %p178 = pneg %p78
        $region22: #{tpu_custom_call.1} parent=15 // pred_check_branch
          %180 = sbr.rel (%p178) target = $region24
        $region23: #{tpu_custom_call.1} parent=15 // pred_region
          %s181 = sand.u32 %s18, 1
          %s182 = scalar_lea.sflag [#allocation7], %s181
          %s183 = sand.u32 %s68, 1
          %s184 = smul.addr %s183, 16
          %s185 = scalar_lea.vmem [#allocation6], %s184
          %s186 = smul.u32 4, %s25
          %s188 = ssub.s32 256, 256
          %189 = vsyncadd %s182, %s188
          %s190 = sadd.s32 %s26, %s186
          %s191 = smul.addr %s190, 64
          %s192 = scalar_lea.hbm %s1, %s191
          %s193 = sshll.u32 %s185, 4
          %s194 = int_to_ptr.vmem [resolvable:$true] %s193
          %199 = dma.hbm_to_vmem [thread:$0]  %s192, 256, %s194, %s182, 64, 64, 4
        $region24: #{tpu_custom_call.1} parent=15 // pred_fallthru
          _
        // Predicated region
        $region25: #{tpu_custom_call.1} parent=15 // pred_check
          %p200 = pneg %p106
        $region26: #{tpu_custom_call.1} parent=15 // pred_check_branch
          %202 = sbr.rel (%p200) target = $region28
        $region27: #{tpu_custom_call.1} parent=15 // pred_region
          %s203 = sand.u32 %s18, 1
          %s204 = scalar_lea.sflag [#allocation7], %s203
          %s205 = sand.u32 %s96, 1
          %s206 = smul.addr %s205, 16
          %s207 = scalar_lea.vmem [#allocation8], %s206
          %s208 = smul.u32 4, %s25
          %s210 = ssub.s32 256, 256
          %211 = vsyncadd %s204, %s210
          %s212 = sadd.s32 %s26, %s208
          %s213 = smul.addr %s212, 64
          %s214 = scalar_lea.hbm %s2, %s213
          %s215 = sshll.u32 %s207, 4
          %s216 = int_to_ptr.vmem [resolvable:$true] %s215
          %221 = dma.hbm_to_vmem [thread:$0]  %s214, 256, %s216, %s204, 64, 64, 4
        $region28: #{tpu_custom_call.1} parent=15 // pred_fallthru
          _
      $region16: #{tpu_custom_call.1} parent=5 // pred_fallthru
        _
      %p222 = scmp.le.s32.totalorder 1, %s18
      %p223 = scmp.lt.s32.totalorder %s18, 3
      %p224 = pnand %p222, %p223
      %p225 = pneg %p224
      // Predicated region
      $region29: #{tpu_custom_call.1} parent=5 // pred_check
        _
      $region30: #{tpu_custom_call.1} parent=5 // pred_check_branch
        %227 = sbr.rel (%p224) target = $region32
      $region31: #{tpu_custom_call.1} parent=5 // pred_region
        %s228 = ssub.s32 %s18, 1
        %s229 = sand.u32 %s43, 1
        %s230 = scalar_lea.sflag [#allocation4], %s229
        %s231 = sand.u32 %s43, 1
        %s232 = smul.addr %s231, 16
        %s233 = scalar_lea.vmem [#allocation3], %s232
        // Predicated region
        $region33: #{tpu_custom_call.1} parent=31 // pred_check
          %p234 = pneg %p56
        $region34: #{tpu_custom_call.1} parent=31 // pred_check_branch
          %236 = sbr.rel (%p234) target = $region36
        $region35: #{tpu_custom_call.1} parent=31 // pred_region
          %237 = dma.done %s230, 256
        $region36: #{tpu_custom_call.1} parent=31 // pred_fallthru
          _
        %s238 = sand.u32 %s23, 1
        %s239 = scalar_lea.sflag [#allocation7], %s238
        %s240 = sand.u32 %s71, 1
        %s241 = smul.addr %s240, 16
        %s242 = scalar_lea.vmem [#allocation6], %s241
        // Predicated region
        $region37: #{tpu_custom_call.1} parent=31 // pred_check
          %p243 = pneg %p84
        $region38: #{tpu_custom_call.1} parent=31 // pred_check_branch
          %245 = sbr.rel (%p243) target = $region40
        $region39: #{tpu_custom_call.1} parent=31 // pred_region
          %246 = dma.done %s239, 256
        $region40: #{tpu_custom_call.1} parent=31 // pred_fallthru
          _
        %s247 = sand.u32 %s23, 1
        %s248 = scalar_lea.sflag [#allocation7], %s247
        %s249 = sand.u32 %s99, 1
        %s250 = smul.addr %s249, 16
        %s251 = scalar_lea.vmem [#allocation8], %s250
        // Predicated region
        $region41: #{tpu_custom_call.1} parent=31 // pred_check
          %p252 = pneg %p112
        $region42: #{tpu_custom_call.1} parent=31 // pred_check_branch
          %254 = sbr.rel (%p252) target = $region44
        $region43: #{tpu_custom_call.1} parent=31 // pred_region
          %255 = dma.done %s248, 256
        $region44: #{tpu_custom_call.1} parent=31 // pred_fallthru
          _
        %s256 = sand.u32 %s43, 1
        %s257 = scalar_lea.sflag [#allocation4], %s256
        %s258 = sand.u32 %s43, 1
        %s259 = smul.addr %s258, 16
        %s260 = scalar_lea.vmem [#allocation3], %s259
        %p261 = pneg %p56
        %p262 = pneg %p53
        %s263 = sand.u32 %s23, 1
        %s264 = scalar_lea.sflag [#allocation7], %s263
        %s265 = sand.u32 %s71, 1
        %s266 = smul.addr %s265, 16
        %s267 = scalar_lea.vmem [#allocation6], %s266
        %p268 = pneg %p84
        %p269 = pneg %p81
        %s270 = sand.u32 %s23, 1
        %s271 = scalar_lea.sflag [#allocation7], %s270
        %s272 = sand.u32 %s99, 1
        %s273 = smul.addr %s272, 16
        %s274 = scalar_lea.vmem [#allocation8], %s273
        %p275 = pneg %p112
        %p276 = pneg %p109
        %p277 = pneg %p138
        %p278 = pneg %p135
        %s279 = sand.u32 %s125, 1
        %s280 = scalar_lea.sflag [#allocation5], %s279
        %s281 = sand.u32 %s125, 1
        %s282 = smul.addr %s281, 32
        %s283 = scalar_lea.vmem [#allocation9], %s282
        %s284 = smul.u32 4, %s27
        %s285 = smul.u32 4, %s27
        %s286 = smul.u32 4, %s27
        %s287 = smul.u32 4, %s27
        %p289 = scmp.eq.s32.totalorder %s28, 0
        // Predicated region
        $region45: #{tpu_custom_call.1} parent=31 // pred_check
          %p290 = pneg %p289
        $region46: #{tpu_custom_call.1} parent=31 // pred_check_branch
          %292 = sbr.rel (%p290) target = $region48
        $region47: #{tpu_custom_call.1} parent=31 // pred_region
          %293 = vst [vmem:[#allocation2] sm:$0xff] 0.0
          %294 = vst [vmem:[#allocation2 + $0x8] sm:$0xff] 0.0
          %295 = vst [vmem:[#allocation2 + $0x10] sm:$0xff] 0.0
          %296 = vst [vmem:[#allocation2 + $0x18] sm:$0xff] 0.0
        $region48: #{tpu_custom_call.1} parent=31 // pred_fallthru
          _
        %v297 = vld [vmem:[%s233] sm:$0xf]
        %v298 = vld [vmem:[%s233 + $0x4] sm:$0xf]
        %v299 = vld [vmem:[%s233 + $0x8] sm:$0xf]
        %v300 = vld [vmem:[%s233 + $0xc] sm:$0xf]
        %v301 = vld [vmem:[%s242] sm:$0xf]
        %v302 = vld [vmem:[%s242 + $0x4] sm:$0xf]
        %v303 = vld [vmem:[%s242 + $0x8] sm:$0xf]
        %v304 = vld [vmem:[%s242 + $0xc] sm:$0xf]
        %v305 = vld [vmem:[%s251] sm:$0xf]
        %v306 = vld [vmem:[%s251 + $0x4] sm:$0xf]
        %v307 = vld [vmem:[%s251 + $0x8] sm:$0xf]
        %v308 = vld [vmem:[%s251 + $0xc] sm:$0xf]
        %v309 = vlaneseq
        %v310 = vshrl.u32 %v309, 7
        %v311 = vlaneseq
        %v312 = vand.u32 %v311, 127
        %s313 = smul.u32 %s28, 8
        %v314 = vstv %s313
        %v315 = vadd.s32 %v312, %v314
        %vm316 = vcmp.eq.s32.totalorder %v310, %v315
        %v317 = vsel %vm316, 0.5, 0.0
        %318 = vmatprep.subr.bf16.mxu0 0
        %319 = vmatpush1.bf16.xpose.msra.mxu0 0
        %320 = vmatprep.subr.bf16.mxu0 0
        %321 = vmatpush1.bf16.xpose.msra.mxu0 0
        %322 = vmatprep.subr.bf16.mxu0 0
        %323 = vmatpush1.bf16.xpose.msra.mxu0 0
        %324 = vmatprep.subr.bf16.mxu0 0
        %325 = vmatpush1.bf16.xpose.msra.mxu0 0
        %326 = vmatprep.subr.bf16.mxu0 0
        %327 = vmatpush1.bf16.xpose.msra.mxu0 0
        %328 = vmatprep.subr.bf16.mxu0 0
        %329 = vmatpush1.bf16.xpose.msra.mxu0 0
        %330 = vmatprep.subr.bf16.mxu0 0
        %331 = vmatpush1.bf16.xpose.msra.mxu0 0
        %332 = vmatprep.subr.bf16.mxu0 0
        %333 = vmatpush1.bf16.xpose.msra.mxu0 %v301
        %334 = vmatprep.subr.bf16.mxu0 0
        %335 = vmatpush2.bf16.xpose.msra.mxu0 0
        %336 = vmatprep.subr.bf16.mxu0 0
        %337 = vmatpush2.bf16.xpose.msra.mxu0 0
        %338 = vmatprep.subr.bf16.mxu0 0
        %339 = vmatpush2.bf16.xpose.msra.mxu0 0
        %340 = vmatprep.subr.bf16.mxu0 0
        %341 = vmatpush2.bf16.xpose.msra.mxu0 0
        %342 = vmatprep.subr.bf16.mxu0 0
        %343 = vmatpush2.bf16.xpose.msra.mxu0 0
        %344 = vmatprep.subr.bf16.mxu0 0
        %345 = vmatpush2.bf16.xpose.msra.mxu0 0
        %346 = vmatprep.subr.bf16.mxu0 0
        %347 = vmatpush2.bf16.xpose.msra.mxu0 0
        %348 = vmatprep.subr.bf16.mxu0 0
        %349 = vmatpush2.bf16.xpose.msra.mxu0 0
        %350 = vmatprep.mubr.bf16.mxu0 0
        %351 = vmatmul.mubr.bf16.gmra.mxu0 %v297
        %v352 = vpop.f32.mrf.mxu0
        %v353 = vadd.f32 %v317, %v352
        %v354 = vpop.f32.mrf.mxu0
        %v355 = vpop.f32.mrf.mxu0
        %v356 = vpop.f32.mrf.mxu0
        %357 = vdwg.mxu0
        %358 = vmatprep.subr.bf16.mxu0 0
        %359 = vmatpush1.bf16.xpose.msra.mxu0 0
        %360 = vmatprep.subr.bf16.mxu0 0
        %361 = vmatpush1.bf16.xpose.msra.mxu0 0
        %362 = vmatprep.subr.bf16.mxu0 0
        %363 = vmatpush1.bf16.xpose.msra.mxu0 0
        %364 = vmatprep.subr.bf16.mxu0 0
        %365 = vmatpush1.bf16.xpose.msra.mxu0 0
        %366 = vmatprep.subr.bf16.mxu0 0
        %367 = vmatpush1.bf16.xpose.msra.mxu0 0
        %368 = vmatprep.subr.bf16.mxu0 0
        %369 = vmatpush1.bf16.xpose.msra.mxu0 0
        %370 = vmatprep.subr.bf16.mxu0 0
        %371 = vmatpush1.bf16.xpose.msra.mxu0 0
        %372 = vmatprep.subr.bf16.mxu0 0
        %373 = vmatpush1.bf16.xpose.msra.mxu0 %v302
        %374 = vmatprep.subr.bf16.mxu0 0
        %375 = vmatpush2.bf16.xpose.msra.mxu0 0
        %376 = vmatprep.subr.bf16.mxu0 0
        %377 = vmatpush2.bf16.xpose.msra.mxu0 0
        %378 = vmatprep.subr.bf16.mxu0 0
        %379 = vmatpush2.bf16.xpose.msra.mxu0 0
        %380 = vmatprep.subr.bf16.mxu0 0
        %381 = vmatpush2.bf16.xpose.msra.mxu0 0
        %382 = vmatprep.subr.bf16.mxu0 0
        %383 = vmatpush2.bf16.xpose.msra.mxu0 0
        %384 = vmatprep.subr.bf16.mxu0 0
        %385 = vmatpush2.bf16.xpose.msra.mxu0 0
        %386 = vmatprep.subr.bf16.mxu0 0
        %387 = vmatpush2.bf16.xpose.msra.mxu0 0
        %388 = vmatprep.subr.bf16.mxu0 0
        %389 = vmatpush2.bf16.xpose.msra.mxu0 0
        %390 = vmatprep.mubr.bf16.mxu0 0
        %391 = vmatmul.mubr.bf16.gmra.mxu0 %v298
        %v392 = vpop.f32.mrf.mxu0
        %v393 = vadd.f32 %v317, %v392
        %v394 = vpop.f32.mrf.mxu0
        %v395 = vpop.f32.mrf.mxu0
        %v396 = vpop.f32.mrf.mxu0
        %397 = vdwg.mxu0
        %398 = vmatprep.subr.bf16.mxu0 0
        %399 = vmatpush1.bf16.xpose.msra.mxu0 0
        %400 = vmatprep.subr.bf16.mxu0 0
        %401 = vmatpush1.bf16.xpose.msra.mxu0 0
        %402 = vmatprep.subr.bf16.mxu0 0
        %403 = vmatpush1.bf16.xpose.msra.mxu0 0
        %404 = vmatprep.subr.bf16.mxu0 0
        %405 = vmatpush1.bf16.xpose.msra.mxu0 0
        %406 = vmatprep.subr.bf16.mxu0 0
        %407 = vmatpush1.bf16.xpose.msra.mxu0 0
        %408 = vmatprep.subr.bf16.mxu0 0
        %409 = vmatpush1.bf16.xpose.msra.mxu0 0
        %410 = vmatprep.subr.bf16.mxu0 0
        %411 = vmatpush1.bf16.xpose.msra.mxu0 0
        %412 = vmatprep.subr.bf16.mxu0 0
        %413 = vmatpush1.bf16.xpose.msra.mxu0 %v303
        %414 = vmatprep.subr.bf16.mxu0 0
        %415 = vmatpush2.bf16.xpose.msra.mxu0 0
        %416 = vmatprep.subr.bf16.mxu0 0
        %417 = vmatpush2.bf16.xpose.msra.mxu0 0
        %418 = vmatprep.subr.bf16.mxu0 0
        %419 = vmatpush2.bf16.xpose.msra.mxu0 0
        %420 = vmatprep.subr.bf16.mxu0 0
        %421 = vmatpush2.bf16.xpose.msra.mxu0 0
        %422 = vmatprep.subr.bf16.mxu0 0
        %423 = vmatpush2.bf16.xpose.msra.mxu0 0
        %424 = vmatprep.subr.bf16.mxu0 0
        %425 = vmatpush2.bf16.xpose.msra.mxu0 0
        %426 = vmatprep.subr.bf16.mxu0 0
        %427 = vmatpush2.bf16.xpose.msra.mxu0 0
        %428 = vmatprep.subr.bf16.mxu0 0
        %429 = vmatpush2.bf16.xpose.msra.mxu0 0
        %430 = vmatprep.mubr.bf16.mxu0 0
        %431 = vmatmul.mubr.bf16.gmra.mxu0 %v299
        %v432 = vpop.f32.mrf.mxu0
        %v433 = vadd.f32 %v317, %v432
        %v434 = vpop.f32.mrf.mxu0
        %v435 = vpop.f32.mrf.mxu0
        %v436 = vpop.f32.mrf.mxu0
        %437 = vdwg.mxu0
        %438 = vmatprep.subr.bf16.mxu0 0
        %439 = vmatpush1.bf16.xpose.msra.mxu0 0
        %440 = vmatprep.subr.bf16.mxu0 0
        %441 = vmatpush1.bf16.xpose.msra.mxu0 0
        %442 = vmatprep.subr.bf16.mxu0 0
        %443 = vmatpush1.bf16.xpose.msra.mxu0 0
        %444 = vmatprep.subr.bf16.mxu0 0
        %445 = vmatpush1.bf16.xpose.msra.mxu0 0
        %446 = vmatprep.subr.bf16.mxu0 0
        %447 = vmatpush1.bf16.xpose.msra.mxu0 0
        %448 = vmatprep.subr.bf16.mxu0 0
        %449 = vmatpush1.bf16.xpose.msra.mxu0 0
        %450 = vmatprep.subr.bf16.mxu0 0
        %451 = vmatpush1.bf16.xpose.msra.mxu0 0
        %452 = vmatprep.subr.bf16.mxu0 0
        %453 = vmatpush1.bf16.xpose.msra.mxu0 %v304
        %454 = vmatprep.subr.bf16.mxu0 0
        %455 = vmatpush2.bf16.xpose.msra.mxu0 0
        %456 = vmatprep.subr.bf16.mxu0 0
        %457 = vmatpush2.bf16.xpose.msra.mxu0 0
        %458 = vmatprep.subr.bf16.mxu0 0
        %459 = vmatpush2.bf16.xpose.msra.mxu0 0
        %460 = vmatprep.subr.bf16.mxu0 0
        %461 = vmatpush2.bf16.xpose.msra.mxu0 0
        %462 = vmatprep.subr.bf16.mxu0 0
        %463 = vmatpush2.bf16.xpose.msra.mxu0 0
        %464 = vmatprep.subr.bf16.mxu0 0
        %465 = vmatpush2.bf16.xpose.msra.mxu0 0
        %466 = vmatprep.subr.bf16.mxu0 0
        %467 = vmatpush2.bf16.xpose.msra.mxu0 0
        %468 = vmatprep.subr.bf16.mxu0 0
        %469 = vmatpush2.bf16.xpose.msra.mxu0 0
        %470 = vmatprep.mubr.bf16.mxu0 0
        %471 = vmatmul.mubr.bf16.gmra.mxu0 %v300
        %v472 = vpop.f32.mrf.mxu0
        %v473 = vadd.f32 %v317, %v472
        %v474 = vpop.f32.mrf.mxu0
        %v475 = vpop.f32.mrf.mxu0
        %v476 = vpop.f32.mrf.mxu0
        %477 = vdwg.mxu0
        %vm478 = vcmask 64512
        %v479 = vsel %vm478, %v353, -inf
        %v480 = vrot.slane %v479, 4
        %v481 = vmax.f32 %v479, %v480
        %v482 = vrot.slane %v481, 2
        %v483 = vmax.f32 %v481, %v482
        %v484 = vrot.slane %v483, 1
        %v485 = vmax.f32 %v483, %v484
        %v486 = vsel %vm478, %v393, -inf
        %v487 = vrot.slane %v486, 4
        %v488 = vmax.f32 %v486, %v487
        %v489 = vrot.slane %v488, 2
        %v490 = vmax.f32 %v488, %v489
        %v491 = vrot.slane %v490, 1
        %v492 = vmax.f32 %v490, %v491
        %v493 = vsel %vm478, %v433, -inf
        %v494 = vrot.slane %v493, 4
        %v495 = vmax.f32 %v493, %v494
        %v496 = vrot.slane %v495, 2
        %v497 = vmax.f32 %v495, %v496
        %v498 = vrot.slane %v497, 1
        %v499 = vmax.f32 %v497, %v498
        %v500 = vsel %vm478, %v473, -inf
        %v501 = vrot.slane %v500, 4
        %v502 = vmax.f32 %v500, %v501
        %v503 = vrot.slane %v502, 2
        %v504 = vmax.f32 %v502, %v503
        %v505 = vrot.slane %v504, 1
        %v506 = vmax.f32 %v504, %v505
        %v507 = vsub.f32 %v353, %v485
        %v508 = vsub.f32 %v393, %v492
        %v509 = vsub.f32 %v433, %v499
        %v510 = vsub.f32 %v473, %v506
        %v511 = vmul.f32 %v507, 1.442695
        %v512 = vpow.pop %v511
        %v513 = vmul.f32 %v508, 1.442695
        %v514 = vpow.pop %v513
        %v515 = vmul.f32 %v509, 1.442695
        %v516 = vpow.pop %v515
        %v517 = vmul.f32 %v510, 1.442695
        %v518 = vpow.pop %v517
        %v519 = vsel %vm478, %v512, 0.0
        %v520 = vrot.slane %v519, 4
        %v521 = vadd.f32 %v519, %v520
        %v522 = vrot.slane %v521, 2
        %v523 = vadd.f32 %v521, %v522
        %v524 = vrot.slane %v523, 1
        %v525 = vadd.f32 %v523, %v524
        %v526 = vsel %vm478, %v514, 0.0
        %v527 = vrot.slane %v526, 4
        %v528 = vadd.f32 %v526, %v527
        %v529 = vrot.slane %v528, 2
        %v530 = vadd.f32 %v528, %v529
        %v531 = vrot.slane %v530, 1
        %v532 = vadd.f32 %v530, %v531
        %v533 = vsel %vm478, %v516, 0.0
        %v534 = vrot.slane %v533, 4
        %v535 = vadd.f32 %v533, %v534
        %v536 = vrot.slane %v535, 2
        %v537 = vadd.f32 %v535, %v536
        %v538 = vrot.slane %v537, 1
        %v539 = vadd.f32 %v537, %v538
        %v540 = vsel %vm478, %v518, 0.0
        %v541 = vrot.slane %v540, 4
        %v542 = vadd.f32 %v540, %v541
        %v543 = vrot.slane %v542, 2
        %v544 = vadd.f32 %v542, %v543
        %v545 = vrot.slane %v544, 1
        %v546 = vadd.f32 %v544, %v545
        %v547 = vrcp.pop %v525
        %v548 = vrcp.pop %v532
        %v549 = vrcp.pop %v539
        %v550 = vrcp.pop %v546
        %v551 = vmul.f32 %v512, %v547
        %v552 = vmul.f32 %v514, %v548
        %v553 = vmul.f32 %v516, %v549
        %v554 = vmul.f32 %v518, %v550
        %v555 = vld [vmem:[#allocation2] sm:$0xff]
        %v556 = vld [vmem:[#allocation2 + $0x8] sm:$0xff]
        %v557 = vld [vmem:[#allocation2 + $0x10] sm:$0xff]
        %v558 = vld [vmem:[#allocation2 + $0x18] sm:$0xff]
        %v559 = vpack.c.bf16 %v551, %v551
        %v560 = vpack.c.bf16 %v552, %v552
        %v561 = vpack.c.bf16 %v553, %v553
        %v562 = vpack.c.bf16 %v554, %v554
        %v564 = vsel %vm478, %v559, 0
        %vm566 = vcmask 1043456
        %v568 = vsel %vm566, %v305, 0
        %570 = vmatprep.subr.bf16.mxu0 0
        %571 = vmatpush1.bf16.msra.mxu0 0
        %572 = vmatprep.subr.bf16.mxu0 0
        %573 = vmatpush1.bf16.msra.mxu0 0
        %574 = vmatprep.subr.bf16.mxu0 0
        %575 = vmatpush1.bf16.msra.mxu0 0
        %576 = vmatprep.subr.bf16.mxu0 0
        %577 = vmatpush1.bf16.msra.mxu0 0
        %578 = vmatprep.subr.bf16.mxu0 0
        %579 = vmatpush1.bf16.msra.mxu0 0
        %580 = vmatprep.subr.bf16.mxu0 0
        %581 = vmatpush1.bf16.msra.mxu0 0
        %582 = vmatprep.subr.bf16.mxu0 0
        %583 = vmatpush1.bf16.msra.mxu0 0
        %584 = vmatprep.subr.bf16.mxu0 0
        %585 = vmatpush1.bf16.msra.mxu0 %v568
        %586 = vmatprep.subr.bf16.mxu0 0
        %587 = vmatpush2.bf16.msra.mxu0 0
        %588 = vmatprep.subr.bf16.mxu0 0
        %589 = vmatpush2.bf16.msra.mxu0 0
        %590 = vmatprep.subr.bf16.mxu0 0
        %591 = vmatpush2.bf16.msra.mxu0 0
        %592 = vmatprep.subr.bf16.mxu0 0
        %593 = vmatpush2.bf16.msra.mxu0 0
        %594 = vmatprep.subr.bf16.mxu0 0
        %595 = vmatpush2.bf16.msra.mxu0 0
        %596 = vmatprep.subr.bf16.mxu0 0
        %597 = vmatpush2.bf16.msra.mxu0 0
        %598 = vmatprep.subr.bf16.mxu0 0
        %599 = vmatpush2.bf16.msra.mxu0 0
        %600 = vmatprep.subr.bf16.mxu0 0
        %601 = vmatpush2.bf16.msra.mxu0 0
        %602 = vmatprep.mubr.bf16.mxu0 0
        %603 = vmatmul.mubr.bf16.gmra.mxu0 %v564
        %v604 = vpop.f32.mrf.mxu0
        %v605 = vadd.f32 0.0, %v604
        %v606 = vpop.f32.mrf.mxu0
        %v607 = vpop.f32.mrf.mxu0
        %v608 = vpop.f32.mrf.mxu0
        %609 = vdwg.mxu0
        %v611 = vsel %vm478, %v560, 0
        %v614 = vsel %vm566, %v306, 0
        %616 = vmatprep.subr.bf16.mxu0 0
        %617 = vmatpush1.bf16.msra.mxu0 0
        %618 = vmatprep.subr.bf16.mxu0 0
        %619 = vmatpush1.bf16.msra.mxu0 0
        %620 = vmatprep.subr.bf16.mxu0 0
        %621 = vmatpush1.bf16.msra.mxu0 0
        %622 = vmatprep.subr.bf16.mxu0 0
        %623 = vmatpush1.bf16.msra.mxu0 0
        %624 = vmatprep.subr.bf16.mxu0 0
        %625 = vmatpush1.bf16.msra.mxu0 0
        %626 = vmatprep.subr.bf16.mxu0 0
        %627 = vmatpush1.bf16.msra.mxu0 0
        %628 = vmatprep.subr.bf16.mxu0 0
        %629 = vmatpush1.bf16.msra.mxu0 0
        %630 = vmatprep.subr.bf16.mxu0 0
        %631 = vmatpush1.bf16.msra.mxu0 %v614
        %632 = vmatprep.subr.bf16.mxu0 0
        %633 = vmatpush2.bf16.msra.mxu0 0
        %634 = vmatprep.subr.bf16.mxu0 0
        %635 = vmatpush2.bf16.msra.mxu0 0
        %636 = vmatprep.subr.bf16.mxu0 0
        %637 = vmatpush2.bf16.msra.mxu0 0
        %638 = vmatprep.subr.bf16.mxu0 0
        %639 = vmatpush2.bf16.msra.mxu0 0
        %640 = vmatprep.subr.bf16.mxu0 0
        %641 = vmatpush2.bf16.msra.mxu0 0
        %642 = vmatprep.subr.bf16.mxu0 0
        %643 = vmatpush2.bf16.msra.mxu0 0
        %644 = vmatprep.subr.bf16.mxu0 0
        %645 = vmatpush2.bf16.msra.mxu0 0
        %646 = vmatprep.subr.bf16.mxu0 0
        %647 = vmatpush2.bf16.msra.mxu0 0
        %648 = vmatprep.mubr.bf16.mxu0 0
        %649 = vmatmul.mubr.bf16.gmra.mxu0 %v611
        %v650 = vpop.f32.mrf.mxu0
        %v651 = vadd.f32 0.0, %v650
        %v652 = vpop.f32.mrf.mxu0
        %v653 = vpop.f32.mrf.mxu0
        %v654 = vpop.f32.mrf.mxu0
        %655 = vdwg.mxu0
        %v657 = vsel %vm478, %v561, 0
        %v660 = vsel %vm566, %v307, 0
        %662 = vmatprep.subr.bf16.mxu0 0
        %663 = vmatpush1.bf16.msra.mxu0 0
        %664 = vmatprep.subr.bf16.mxu0 0
        %665 = vmatpush1.bf16.msra.mxu0 0
        %666 = vmatprep.subr.bf16.mxu0 0
        %667 = vmatpush1.bf16.msra.mxu0 0
        %668 = vmatprep.subr.bf16.mxu0 0
        %669 = vmatpush1.bf16.msra.mxu0 0
        %670 = vmatprep.subr.bf16.mxu0 0
        %671 = vmatpush1.bf16.msra.mxu0 0
        %672 = vmatprep.subr.bf16.mxu0 0
        %673 = vmatpush1.bf16.msra.mxu0 0
        %674 = vmatprep.subr.bf16.mxu0 0
        %675 = vmatpush1.bf16.msra.mxu0 0
        %676 = vmatprep.subr.bf16.mxu0 0
        %677 = vmatpush1.bf16.msra.mxu0 %v660
        %678 = vmatprep.subr.bf16.mxu0 0
        %679 = vmatpush2.bf16.msra.mxu0 0
        %680 = vmatprep.subr.bf16.mxu0 0
        %681 = vmatpush2.bf16.msra.mxu0 0
        %682 = vmatprep.subr.bf16.mxu0 0
        %683 = vmatpush2.bf16.msra.mxu0 0
        %684 = vmatprep.subr.bf16.mxu0 0
        %685 = vmatpush2.bf16.msra.mxu0 0
        %686 = vmatprep.subr.bf16.mxu0 0
        %687 = vmatpush2.bf16.msra.mxu0 0
        %688 = vmatprep.subr.bf16.mxu0 0
        %689 = vmatpush2.bf16.msra.mxu0 0
        %690 = vmatprep.subr.bf16.mxu0 0
        %691 = vmatpush2.bf16.msra.mxu0 0
        %692 = vmatprep.subr.bf16.mxu0 0
        %693 = vmatpush2.bf16.msra.mxu0 0
        %694 = vmatprep.mubr.bf16.mxu0 0
        %695 = vmatmul.mubr.bf16.gmra.mxu0 %v657
        %v696 = vpop.f32.mrf.mxu0
        %v697 = vadd.f32 0.0, %v696
        %v698 = vpop.f32.mrf.mxu0
        %v699 = vpop.f32.mrf.mxu0
        %v700 = vpop.f32.mrf.mxu0
        %701 = vdwg.mxu0
        %v703 = vsel %vm478, %v562, 0
        %v706 = vsel %vm566, %v308, 0
        %708 = vmatprep.subr.bf16.mxu0 0
        %709 = vmatpush1.bf16.msra.mxu0 0
        %710 = vmatprep.subr.bf16.mxu0 0
        %711 = vmatpush1.bf16.msra.mxu0 0
        %712 = vmatprep.subr.bf16.mxu0 0
        %713 = vmatpush1.bf16.msra.mxu0 0
        %714 = vmatprep.subr.bf16.mxu0 0
        %715 = vmatpush1.bf16.msra.mxu0 0
        %716 = vmatprep.subr.bf16.mxu0 0
        %717 = vmatpush1.bf16.msra.mxu0 0
        %718 = vmatprep.subr.bf16.mxu0 0
        %719 = vmatpush1.bf16.msra.mxu0 0
        %720 = vmatprep.subr.bf16.mxu0 0
        %721 = vmatpush1.bf16.msra.mxu0 0
        %722 = vmatprep.subr.bf16.mxu0 0
        %723 = vmatpush1.bf16.msra.mxu0 %v706
        %724 = vmatprep.subr.bf16.mxu0 0
        %725 = vmatpush2.bf16.msra.mxu0 0
        %726 = vmatprep.subr.bf16.mxu0 0
        %727 = vmatpush2.bf16.msra.mxu0 0
        %728 = vmatprep.subr.bf16.mxu0 0
        %729 = vmatpush2.bf16.msra.mxu0 0
        %730 = vmatprep.subr.bf16.mxu0 0
        %731 = vmatpush2.bf16.msra.mxu0 0
        %732 = vmatprep.subr.bf16.mxu0 0
        %733 = vmatpush2.bf16.msra.mxu0 0
        %734 = vmatprep.subr.bf16.mxu0 0
        %735 = vmatpush2.bf16.msra.mxu0 0
        %736 = vmatprep.subr.bf16.mxu0 0
        %737 = vmatpush2.bf16.msra.mxu0 0
        %738 = vmatprep.subr.bf16.mxu0 0
        %739 = vmatpush2.bf16.msra.mxu0 0
        %740 = vmatprep.mubr.bf16.mxu0 0
        %741 = vmatmul.mubr.bf16.gmra.mxu0 %v703
        %v742 = vpop.f32.mrf.mxu0
        %v743 = vadd.f32 0.0, %v742
        %v744 = vpop.f32.mrf.mxu0
        %v745 = vpop.f32.mrf.mxu0
        %v746 = vpop.f32.mrf.mxu0
        %747 = vdwg.mxu0
        %v748 = vadd.f32 %v555, %v605
        %v749 = vadd.f32 %v556, %v651
        %v750 = vadd.f32 %v557, %v697
        %v751 = vadd.f32 %v558, %v743
        %752 = vst [vmem:[#allocation2] sm:$0xff] %v748
        %753 = vst [vmem:[#allocation2 + $0x8] sm:$0xff] %v749
        %754 = vst [vmem:[#allocation2 + $0x10] sm:$0xff] %v750
        %755 = vst [vmem:[#allocation2 + $0x18] sm:$0xff] %v751
        // Predicated region
        $region49: #{tpu_custom_call.1} parent=31 // pred_check
          %p756 = pneg %p289
        $region50: #{tpu_custom_call.1} parent=31 // pred_check_branch
          %758 = sbr.rel (%p756) target = $region52
        $region51: #{tpu_custom_call.1} parent=31 // pred_region
          %v759 = vld [vmem:[#allocation2] sm:$0xff]
          %v760 = vld [vmem:[#allocation2 + $0x8] sm:$0xff]
          %v761 = vld [vmem:[#allocation2 + $0x10] sm:$0xff]
          %v762 = vld [vmem:[#allocation2 + $0x18] sm:$0xff]
          %763 = vst [vmem:[%s283] sm:$0xff] %v759
          %764 = vst [vmem:[%s283 + $0x8] sm:$0xff] %v760
          %765 = vst [vmem:[%s283 + $0x10] sm:$0xff] %v761
          %766 = vst [vmem:[%s283 + $0x18] sm:$0xff] %v762
        $region52: #{tpu_custom_call.1} parent=31 // pred_fallthru
          _
        %s767 = sand.u32 %s125, 1
        %s768 = scalar_lea.sflag [#allocation5], %s767
        %s769 = sand.u32 %s125, 1
        %s770 = smul.addr %s769, 32
        %s771 = scalar_lea.vmem [#allocation9], %s770
        // Predicated region
        $region53: #{tpu_custom_call.1} parent=31 // pred_check
          %p772 = pneg %p135
        $region54: #{tpu_custom_call.1} parent=31 // pred_check_branch
          %774 = sbr.rel (%p772) target = $region56
        $region55: #{tpu_custom_call.1} parent=31 // pred_region
          %s775 = smul.u32 4, %s27
          %s777 = ssub.s32 512, 512
          %778 = vsyncadd %s768, %s777
          %s779 = smul.addr %s775, 128
          %s780 = scalar_lea.hbm %s3, %s779
          %s781 = sshll.u32 %s771, 4
          %s782 = int_to_ptr.vmem [resolvable:$true] %s781
          %787 = dma.vmem_to_hbm [thread:$0]  %s782, 512, %s780, %s768, 128, 128, 8
        $region56: #{tpu_custom_call.1} parent=31 // pred_fallthru
          _
      $region32: #{tpu_custom_call.1} parent=5 // pred_fallthru
        _
      %p788 = scmp.le.s32.totalorder 2, %s18
      // Predicated region
      $region57: #{tpu_custom_call.1} parent=5 // pred_check
        %p789 = pneg %p788
      $region58: #{tpu_custom_call.1} parent=5 // pred_check_branch
        %791 = sbr.rel (%p789) target = $region60
      $region59: #{tpu_custom_call.1} parent=5 // pred_region
        %s792 = ssub.s32 %s18, 2
        // Predicated region
        $region61: #{tpu_custom_call.1} parent=59 // pred_check
          %p793 = pneg %p141
        $region62: #{tpu_custom_call.1} parent=59 // pred_check_branch
          %795 = sbr.rel (%p793) target = $region64
        $region63: #{tpu_custom_call.1} parent=59 // pred_region
          %s796 = sand.u32 %s126, 1
          %s797 = scalar_lea.sflag [#allocation5], %s796
          %s798 = sand.u32 %s126, 1
          %s799 = smul.addr %s798, 32
          %s800 = scalar_lea.vmem [#allocation9], %s799
          %801 = dma.done %s797, 512
        $region64: #{tpu_custom_call.1} parent=59 // pred_fallthru
          _
      $region60: #{tpu_custom_call.1} parent=5 // pred_fallthru
        _
    $region6: #{tpu_custom_call.1} parent=1 // loop_footer
      %s22 = sadd.s32 1, %s18
    $region7: #{tpu_custom_call.1} parent=1 // loop_footer_branch
      %17 = sbr.rel target = $region3
    $region8: #{tpu_custom_call.1} parent=1 // loop_exit
      _
    %802 = vsyncpa [#allocation4], 1
    %s803 = scalar_lea.sflag [#allocation4], 1
    %804 = vsyncpa %s803, 1
    %805 = vsyncpa [#allocation7], 1
    %s806 = scalar_lea.sflag [#allocation7], 1
    %807 = vsyncpa %s806, 1
    %808 = vsyncpa [#allocation5], 1
    %s809 = scalar_lea.sflag [#allocation5], 1
    %810 = vsyncpa %s809, 1

</llo_original>
